<compile_context>
chip_gen: v7x
topology: tpu7x:2x2x1
jax: 0.10.0
libtpu: 0.0.40
codegen_flags: <defaults>
</compile_context>

<pallas_src>
import functools

import jax
import jax.numpy as jnp
from jax.experimental import pallas as pl
from jax.experimental.pallas import tpu as pltpu


def _round_up(x, m):
    return (x + m - 1) // m * m


def _gemm_bias_act_kernel(w_ref, x_ref, b_ref, o_ref, *, negative_slope):
    """Fused (OC,K)@(K,TM) GEMM + bias + optional LeakyReLU; f32 accumulate."""
    acc = jnp.dot(w_ref[...], x_ref[...], preferred_element_type=jnp.float32)
    acc = acc + b_ref[...]
    if negative_slope is not None:
        acc = jnp.where(acc >= 0, acc, negative_slope * acc)
    o_ref[...] = acc.astype(o_ref.dtype)


def conv2d_pallas(x, weight, bias, *, stride, padding, negative_slope=None,
                  tm_cap=512):
    """Conv2d (PyTorch semantics) on a channels-first-flat activation.

    x:      (C, N, H, W) float32
    weight: (OC, C, kh, kw), bias: (OC,)
    returns (OC, N, OH, OW) float32
    """
    C, N, H, W = x.shape
    OC, Cin, kh, kw = weight.shape
    assert Cin == C and kh == kw
    k = kh

    xp = jnp.pad(x, ((0, 0), (0, 0), (padding, padding), (padding, padding)))
    Hp, Wp = H + 2 * padding, W + 2 * padding
    OH = (Hp - k) // stride + 1
    OW = (Wp - k) // stride + 1

    # Transposed im2col: patches_T (K, M); K ordering is (C, ki, kj) to match
    # weight.reshape(OC, C*k*k).
    taps = []
    for ki in range(k):
        for kj in range(k):
            taps.append(xp[:, :, ki:ki + stride * OH:stride,
                           kj:kj + stride * OW:stride])        # (C, N, OH, OW)
    K = C * k * k
    M = N * OH * OW
    patches_t = jnp.stack(taps, axis=1).reshape(K, M)

    # Pad to MXU / vreg friendly shapes (padded rows/cols are zeros).
    Kp = _round_up(K, 128)
    OCp = _round_up(OC, 8)
    TM = min(tm_cap, _round_up(M, 128))
    Mp = _round_up(M, TM)

    patches_t = jnp.pad(patches_t, ((0, Kp - K), (0, Mp - M))).astype(jnp.bfloat16)
    w2 = jnp.pad(weight.reshape(OC, K),
                 ((0, OCp - OC), (0, Kp - K))).astype(jnp.bfloat16)
    b2 = jnp.pad(bias.reshape(OC, 1), ((0, OCp - OC), (0, 0))).astype(jnp.float32)

    kernel = functools.partial(_gemm_bias_act_kernel,
                               negative_slope=negative_slope)
    out = pl.pallas_call(
        kernel,
        out_shape=jax.ShapeDtypeStruct((OCp, Mp), jnp.float32),
        grid=(Mp // TM,),
        in_specs=[
            pl.BlockSpec((OCp, Kp), lambda i: (0, 0)),   # weights (resident)
            pl.BlockSpec((Kp, TM), lambda i: (0, i)),    # patch tile (pipelined)
            pl.BlockSpec((OCp, 1), lambda i: (0, 0)),    # bias (resident)
        ],
        out_specs=pl.BlockSpec((OCp, TM), lambda i: (0, i)),
        compiler_params=pltpu.CompilerParams(
            dimension_semantics=("parallel",),
            vmem_limit_bytes=32 * 1024 * 1024),
    )(w2, patches_t, b2)

    return out[:OC, :M].reshape(OC, N, OH, OW)


def init_no_norm_discriminator_params(key, input_nc, ndf=8, n_layers=3):
    """Mirror the reference __init__ (typo preserved: nf_mult stays 1)."""
    kw = 4
    layer_defs = []  # (in_ch, out_ch, stride)
    layer_defs.append((input_nc, ndf, 2))
    nf_mult = 1
    for n in range(1, n_layers):
        nf_mult_prev = nf_mult
        # nf_mutl = min(2 ** n, 8)   <- typo in reference; nf_mult unchanged
        layer_defs.append((ndf * nf_mult_prev, ndf * nf_mult, 2))
    nf_mult_prev = nf_mult
    layer_defs.append((ndf * nf_mult_prev, ndf * nf_mult, 1))
    layer_defs.append((ndf * nf_mult, 1, 1))

    params = []
    for (cin, cout, stride) in layer_defs:
        key, kw_key, kb_key = jax.random.split(key, 3)
        w = 0.05 * jax.random.normal(kw_key, (cout, cin, kw, kw), jnp.float32)
        b = 0.05 * jax.random.normal(kb_key, (cout,), jnp.float32)
        params.append({"w": w, "b": b, "stride": stride})
    return params


@functools.partial(jax.jit, static_argnames=("strides",))
def _forward_impl(x, weights, biases, strides):
    padw = 2  # int(np.ceil((4 - 1) / 2))
    act = jnp.transpose(x, (1, 0, 2, 3)).astype(jnp.float32)   # NCHW -> CNHW
    n = len(weights)
    for i in range(n):
        slope = 0.2 if i < n - 1 else None  # last conv has no activation
        act = conv2d_pallas(act, weights[i], biases[i],
                            stride=strides[i], padding=padw,
                            negative_slope=slope)
    return jnp.transpose(act, (1, 0, 2, 3))                    # -> NCHW


def no_norm_discriminator_forward(x, params):
    weights = tuple(p["w"] for p in params)
    biases = tuple(p["b"] for p in params)
    strides = tuple(int(p["stride"]) for p in params)
    return _forward_impl(x, weights, biases, strides)


if __name__ == "__main__":
    key = jax.random.PRNGKey(0)
    key, xkey, pkey = jax.random.split(key, 3)

    # Small shapes: batch=2, input_nc=4, spatial 16x16, ndf=8, n_layers=3.
    input_nc, ndf, n_layers = 4, 8, 3
    x = jax.random.normal(xkey, (2, input_nc, 16, 16), jnp.float32)

    params = init_no_norm_discriminator_params(pkey, input_nc, ndf, n_layers)

    out = no_norm_discriminator_forward(x, params)
    out = jax.block_until_ready(out)

    # Expected spatial trace (k=4, p=2): 16 -> 9 -> 5 -> 3 -> 4 -> 5, OC=1.
    assert out.shape == (2, 1, 5, 5), out.shape
    assert jnp.all(jnp.isfinite(out))
    print("KERNEL_OK")
</pallas_src>

<mosaic_0001>
module attributes {stable_mosaic.version = 11 : i64} {
  func.func @_gemm_bias_act_kernel(%arg0: i32, %arg1: memref<8x128xbf16, #tpu.memory_space<vmem>>, %arg2: memref<128x256xbf16, #tpu.memory_space<vmem>>, %arg3: memref<8x1xf32, #tpu.memory_space<vmem>>, %arg4: memref<8x256xf32, #tpu.memory_space<vmem>>) attributes {dimension_semantics = [#tpu.dimension_semantics<parallel>], iteration_bounds = array<i64: 1>, scalar_prefetch = 0 : i64, scratch_operands = 0 : i64, tpu.core_type = #tpu.core_type<tc>, window_params = [{pipeline_mode = #tpu.pipeline_mode<synchronous>, transform_indices = @transform_0, window_bounds = array<i64: 8, 128>}, {transform_indices = @transform_1, window_bounds = array<i64: 128, 256>}, {pipeline_mode = #tpu.pipeline_mode<synchronous>, transform_indices = @transform_2, window_bounds = array<i64: 8, 1>}, {transform_indices = @transform_3, window_bounds = array<i64: 8, 256>}]} {
    %c0 = arith.constant 0 : index
    %c0_0 = arith.constant 0 : index
    %0 = vector.load %arg1[%c0, %c0_0] : memref<8x128xbf16, #tpu.memory_space<vmem>>, vector<8x128xbf16>
    %c0_1 = arith.constant 0 : index
    %c0_2 = arith.constant 0 : index
    %1 = vector.load %arg2[%c0_1, %c0_2] : memref<128x256xbf16, #tpu.memory_space<vmem>>, vector<128x256xbf16>
    %cst = arith.constant dense<0.000000e+00> : vector<8x256xf32>
    %2 = tpu.matmul %0, %1, %cst {dimension_numbers = #tpu.dot_dimension_numbers<[1], [0], [0], [1], [0, 0, 1, 1], [], []>} : vector<8x128xbf16>, vector<128x256xbf16>, vector<8x256xf32> -> vector<8x256xf32>
    %c0_3 = arith.constant 0 : index
    %c0_4 = arith.constant 0 : index
    %3 = vector.load %arg3[%c0_3, %c0_4] : memref<8x1xf32, #tpu.memory_space<vmem>>, vector<8x1xf32>
    %4 = vector.broadcast %3 : vector<8x1xf32> to vector<8x256xf32>
    %5 = arith.addf %2, %4 : vector<8x256xf32>
    %cst_5 = arith.constant 0.000000e+00 : f32
    %6 = vector.broadcast %cst_5 : f32 to vector<8x256xf32>
    %7 = arith.cmpf oge, %5, %6 : vector<8x256xf32>
    %cst_6 = arith.constant 2.000000e-01 : f32
    %8 = vector.broadcast %cst_6 : f32 to vector<8x256xf32>
    %9 = arith.mulf %8, %5 : vector<8x256xf32>
    %10 = arith.select %7, %5, %9 : vector<8x256xi1>, vector<8x256xf32>
    %c0_7 = arith.constant 0 : index
    %c0_8 = arith.constant 0 : index
    %11 = vector.load %arg4[%c0_7, %c0_8] : memref<8x256xf32, #tpu.memory_space<vmem>>, vector<8x256xf32>
    tpu.vector_store %arg4[%c0_7, %c0_8], %10 {strides = array<i32>} : memref<8x256xf32, #tpu.memory_space<vmem>>, vector<8x256xf32>,
    return
  }
  func.func @transform_0(%arg0: i32) -> (i32, i32) {
    %c0_i32 = arith.constant 0 : i32
    %c0_i32_0 = arith.constant 0 : i32
    %c0_i32_1 = arith.constant 0 : i32
    return %c0_i32, %c0_i32_0 : i32, i32
  }
  func.func @transform_1(%arg0: i32) -> (i32, i32) {
    %c0_i32 = arith.constant 0 : i32
    %c0_i32_0 = arith.constant 0 : i32
    return %c0_i32, %arg0 : i32, i32
  }
  func.func @transform_2(%arg0: i32) -> (i32, i32) {
    %c0_i32 = arith.constant 0 : i32
    %c0_i32_0 = arith.constant 0 : i32
    %c0_i32_1 = arith.constant 0 : i32
    return %c0_i32, %c0_i32_0 : i32, i32
  }
  func.func @transform_3(%arg0: i32) -> (i32, i32) {
    %c0_i32 = arith.constant 0 : i32
    %c0_i32_0 = arith.constant 0 : i32
    return %c0_i32, %arg0 : i32, i32
  }
}

module attributes {stable_mosaic.version = 11 : i64} {
  func.func @_gemm_bias_act_kernel(%arg0: i32, %arg1: memref<8x128xbf16, #tpu.memory_space<vmem>>, %arg2: memref<128x128xbf16, #tpu.memory_space<vmem>>, %arg3: memref<8x1xf32, #tpu.memory_space<vmem>>, %arg4: memref<8x128xf32, #tpu.memory_space<vmem>>) attributes {dimension_semantics = [#tpu.dimension_semantics<parallel>], iteration_bounds = array<i64: 1>, scalar_prefetch = 0 : i64, scratch_operands = 0 : i64, tpu.core_type = #tpu.core_type<tc>, window_params = [{pipeline_mode = #tpu.pipeline_mode<synchronous>, transform_indices = @transform_0, window_bounds = array<i64: 8, 128>}, {transform_indices = @transform_1, window_bounds = array<i64: 128, 128>}, {pipeline_mode = #tpu.pipeline_mode<synchronous>, transform_indices = @transform_2, window_bounds = array<i64: 8, 1>}, {transform_indices = @transform_3, window_bounds = array<i64: 8, 128>}]} {
    %c0 = arith.constant 0 : index
    %c0_0 = arith.constant 0 : index
    %0 = vector.load %arg1[%c0, %c0_0] : memref<8x128xbf16, #tpu.memory_space<vmem>>, vector<8x128xbf16>
    %c0_1 = arith.constant 0 : index
    %c0_2 = arith.constant 0 : index
    %1 = vector.load %arg2[%c0_1, %c0_2] : memref<128x128xbf16, #tpu.memory_space<vmem>>, vector<128x128xbf16>
    %cst = arith.constant dense<0.000000e+00> : vector<8x128xf32>
    %2 = tpu.matmul %0, %1, %cst {dimension_numbers = #tpu.dot_dimension_numbers<[1], [0], [0], [1], [0, 0, 1, 1], [], []>} : vector<8x128xbf16>, vector<128x128xbf16>, vector<8x128xf32> -> vector<8x128xf32>
    %c0_3 = arith.constant 0 : index
    %c0_4 = arith.constant 0 : index
    %3 = vector.load %arg3[%c0_3, %c0_4] : memref<8x1xf32, #tpu.memory_space<vmem>>, vector<8x1xf32>
    %4 = vector.broadcast %3 : vector<8x1xf32> to vector<8x128xf32>
    %5 = arith.addf %2, %4 : vector<8x128xf32>
    %cst_5 = arith.constant 0.000000e+00 : f32
    %6 = vector.broadcast %cst_5 : f32 to vector<8x128xf32>
    %7 = arith.cmpf oge, %5, %6 : vector<8x128xf32>
    %cst_6 = arith.constant 2.000000e-01 : f32
    %8 = vector.broadcast %cst_6 : f32 to vector<8x128xf32>
    %9 = arith.mulf %8, %5 : vector<8x128xf32>
    %10 = arith.select %7, %5, %9 : vector<8x128xi1>, vector<8x128xf32>
    %c0_7 = arith.constant 0 : index
    %c0_8 = arith.constant 0 : index
    %11 = vector.load %arg4[%c0_7, %c0_8] : memref<8x128xf32, #tpu.memory_space<vmem>>, vector<8x128xf32>
    tpu.vector_store %arg4[%c0_7, %c0_8], %10 {strides = array<i32>} : memref<8x128xf32, #tpu.memory_space<vmem>>, vector<8x128xf32>,
    return
  }
  func.func @transform_0(%arg0: i32) -> (i32, i32) {
    %c0_i32 = arith.constant 0 : i32
    %c0_i32_0 = arith.constant 0 : i32
    %c0_i32_1 = arith.constant 0 : i32
    return %c0_i32, %c0_i32_0 : i32, i32
  }
  func.func @transform_1(%arg0: i32) -> (i32, i32) {
    %c0_i32 = arith.constant 0 : i32
    %c0_i32_0 = arith.constant 0 : i32
    return %c0_i32, %arg0 : i32, i32
  }
  func.func @transform_2(%arg0: i32) -> (i32, i32) {
    %c0_i32 = arith.constant 0 : i32
    %c0_i32_0 = arith.constant 0 : i32
    %c0_i32_1 = arith.constant 0 : i32
    return %c0_i32, %c0_i32_0 : i32, i32
  }
  func.func @transform_3(%arg0: i32) -> (i32, i32) {
    %c0_i32 = arith.constant 0 : i32
    %c0_i32_0 = arith.constant 0 : i32
    return %c0_i32, %arg0 : i32, i32
  }
}

module attributes {stable_mosaic.version = 11 : i64} {
  func.func @_gemm_bias_act_kernel(%arg0: i32, %arg1: memref<8x128xbf16, #tpu.memory_space<vmem>>, %arg2: memref<128x128xbf16, #tpu.memory_space<vmem>>, %arg3: memref<8x1xf32, #tpu.memory_space<vmem>>, %arg4: memref<8x128xf32, #tpu.memory_space<vmem>>) attributes {dimension_semantics = [#tpu.dimension_semantics<parallel>], iteration_bounds = array<i64: 1>, scalar_prefetch = 0 : i64, scratch_operands = 0 : i64, tpu.core_type = #tpu.core_type<tc>, window_params = [{pipeline_mode = #tpu.pipeline_mode<synchronous>, transform_indices = @transform_0, window_bounds = array<i64: 8, 128>}, {transform_indices = @transform_1, window_bounds = array<i64: 128, 128>}, {pipeline_mode = #tpu.pipeline_mode<synchronous>, transform_indices = @transform_2, window_bounds = array<i64: 8, 1>}, {transform_indices = @transform_3, window_bounds = array<i64: 8, 128>}]} {
    %c0 = arith.constant 0 : index
    %c0_0 = arith.constant 0 : index
    %0 = vector.load %arg1[%c0, %c0_0] : memref<8x128xbf16, #tpu.memory_space<vmem>>, vector<8x128xbf16>
    %c0_1 = arith.constant 0 : index
    %c0_2 = arith.constant 0 : index
    %1 = vector.load %arg2[%c0_1, %c0_2] : memref<128x128xbf16, #tpu.memory_space<vmem>>, vector<128x128xbf16>
    %cst = arith.constant dense<0.000000e+00> : vector<8x128xf32>
    %2 = tpu.matmul %0, %1, %cst {dimension_numbers = #tpu.dot_dimension_numbers<[1], [0], [0], [1], [0, 0, 1, 1], [], []>} : vector<8x128xbf16>, vector<128x128xbf16>, vector<8x128xf32> -> vector<8x128xf32>
    %c0_3 = arith.constant 0 : index
    %c0_4 = arith.constant 0 : index
    %3 = vector.load %arg3[%c0_3, %c0_4] : memref<8x1xf32, #tpu.memory_space<vmem>>, vector<8x1xf32>
    %4 = vector.broadcast %3 : vector<8x1xf32> to vector<8x128xf32>
    %5 = arith.addf %2, %4 : vector<8x128xf32>
    %c0_5 = arith.constant 0 : index
    %c0_6 = arith.constant 0 : index
    %6 = vector.load %arg4[%c0_5, %c0_6] : memref<8x128xf32, #tpu.memory_space<vmem>>, vector<8x128xf32>
    tpu.vector_store %arg4[%c0_5, %c0_6], %5 {strides = array<i32>} : memref<8x128xf32, #tpu.memory_space<vmem>>, vector<8x128xf32>,
    return
  }
  func.func @transform_0(%arg0: i32) -> (i32, i32) {
    %c0_i32 = arith.constant 0 : i32
    %c0_i32_0 = arith.constant 0 : i32
    %c0_i32_1 = arith.constant 0 : i32
    return %c0_i32, %c0_i32_0 : i32, i32
  }
  func.func @transform_1(%arg0: i32) -> (i32, i32) {
    %c0_i32 = arith.constant 0 : i32
    %c0_i32_0 = arith.constant 0 : i32
    return %c0_i32, %arg0 : i32, i32
  }
  func.func @transform_2(%arg0: i32) -> (i32, i32) {
    %c0_i32 = arith.constant 0 : i32
    %c0_i32_0 = arith.constant 0 : i32
    %c0_i32_1 = arith.constant 0 : i32
    return %c0_i32, %c0_i32_0 : i32, i32
  }
  func.func @transform_3(%arg0: i32) -> (i32, i32) {
    %c0_i32 = arith.constant 0 : i32
    %c0_i32_0 = arith.constant 0 : i32
    return %c0_i32, %arg0 : i32, i32
  }
}

</mosaic_0001>

<llo_original>
// kernel: _forward_impl.5
$region0: #{_forward_impl.5}
  #allocation0 [shape = 'u32[]', space=smem, size = 0x4, offset = 0x4, fixed_abs, tag = 'smem constant byte address 0x4 - core index']
  #allocation1 [shape = 'u32[144,128]{1,0:T(1,128)}', space=vmem, size = 0x12000, scoped, tag = 'internal scratch']
  %s0 = inlined_call_operand.vmem [shape: bf16[8,128], index: 0, kind: input, shape index: {}]
  %s1 = inlined_call_operand.vmem [shape: bf16[128,256], index: 1, kind: input, shape index: {}]
  %s2 = inlined_call_operand.vmem [shape: f32[8,1], index: 2, kind: input, shape index: {}]
  %s3 = inlined_call_operand.vmem [shape: f32[8,256], index: 3, kind: output, shape index: {}]
  %s4 = sld [smem:[#allocation0]]
  $region22: #{_forward_impl.5} parent=0
    _
  %s6 = ssub.s32 1, %s4
  %s7 = scalar_select 0, %s6, %s4
  // Predicated region
  $region2: #{_forward_impl.5} parent=0 // pred_check
    _
  $region3: #{_forward_impl.5} parent=0 // pred_check_branch
    %9 = sbr.rel (0) target = $region5
  $region4: #{_forward_impl.5} parent=0 // pred_region
    _
  $region5: #{_forward_impl.5} parent=0 // pred_fallthru
    _
  // Predicated region
  $region6: #{_forward_impl.5} parent=0 // pred_check
    _
  $region7: #{_forward_impl.5} parent=0 // pred_check_branch
    %11 = sbr.rel (0) target = $region9
  $region8: #{_forward_impl.5} parent=0 // pred_region
    _
  $region9: #{_forward_impl.5} parent=0 // pred_fallthru
    _
  // Predicated region
  $region10: #{_forward_impl.5} parent=0 // pred_check
    _
  $region11: #{_forward_impl.5} parent=0 // pred_check_branch
    %13 = sbr.rel (0) target = $region13
  $region12: #{_forward_impl.5} parent=0 // pred_region
    _
  $region13: #{_forward_impl.5} parent=0 // pred_fallthru
    _
  %v15 = vld [vmem:[%s0] sm:$0xf]
  %v16 = vld [vmem:[%s1] sm:$0xff]
  %v17 = vld [vmem:[%s1 + $0x8] sm:$0xff]
  %v18 = vld [vmem:[%s1 + $0x10] sm:$0xff]
  %v19 = vld [vmem:[%s1 + $0x18] sm:$0xff]
  %v20 = vld [vmem:[%s1 + $0x20] sm:$0xff]
  %v21 = vld [vmem:[%s1 + $0x28] sm:$0xff]
  %v22 = vld [vmem:[%s1 + $0x30] sm:$0xff]
  %v23 = vld [vmem:[%s1 + $0x38] sm:$0xff]
  %v24 = vld [vmem:[%s1 + $0x40] sm:$0xff]
  %v25 = vld [vmem:[%s1 + $0x48] sm:$0xff]
  %v26 = vld [vmem:[%s1 + $0x50] sm:$0xff]
  %v27 = vld [vmem:[%s1 + $0x58] sm:$0xff]
  %v28 = vld [vmem:[%s1 + $0x60] sm:$0xff]
  %v29 = vld [vmem:[%s1 + $0x68] sm:$0xff]
  %v30 = vld [vmem:[%s1 + $0x70] sm:$0xff]
  %v31 = vld [vmem:[%s1 + $0x78] sm:$0xff]
  %v32 = vld [vmem:[%s2] sm:$0xff]
  %34 = vset.pattern.permute.xlu0 0
  %35 = vperm.xlu0 %34, %v32
  %v36 = vpop.permute.xlu0 %35
  %v54 = vunpack.c.l.b16 %v16
  %v55 = vunpack.c.h.b16 %v16
  %v56 = vunpack.c.l.b16 %v17
  %v57 = vunpack.c.h.b16 %v17
  %v58 = vunpack.c.l.b16 %v18
  %v59 = vunpack.c.h.b16 %v18
  %v60 = vunpack.c.l.b16 %v19
  %v61 = vunpack.c.h.b16 %v19
  %v62 = vunpack.c.l.b16 %v20
  %v63 = vunpack.c.h.b16 %v20
  %v64 = vunpack.c.l.b16 %v21
  %v65 = vunpack.c.h.b16 %v21
  %v66 = vunpack.c.l.b16 %v22
  %v67 = vunpack.c.h.b16 %v22
  %v68 = vunpack.c.l.b16 %v23
  %v69 = vunpack.c.h.b16 %v23
  %v70 = vunpack.c.l.b16 %v24
  %v71 = vunpack.c.h.b16 %v24
  %v72 = vunpack.c.l.b16 %v25
  %v73 = vunpack.c.h.b16 %v25
  %v74 = vunpack.c.l.b16 %v26
  %v75 = vunpack.c.h.b16 %v26
  %v76 = vunpack.c.l.b16 %v27
  %v77 = vunpack.c.h.b16 %v27
  %v78 = vunpack.c.l.b16 %v28
  %v79 = vunpack.c.h.b16 %v28
  %v80 = vunpack.c.l.b16 %v29
  %v81 = vunpack.c.h.b16 %v29
  %v82 = vunpack.c.l.b16 %v30
  %v83 = vunpack.c.h.b16 %v30
  %v84 = vunpack.c.l.b16 %v31
  %v85 = vunpack.c.h.b16 %v31
  %v86 = vpack.c.b16 %v56, %v54
  %v87 = vpack.c.b16 %v57, %v55
  %v88 = vpack.c.b16 %v60, %v58
  %v89 = vpack.c.b16 %v61, %v59
  %v90 = vpack.c.b16 %v64, %v62
  %v91 = vpack.c.b16 %v65, %v63
  %v92 = vpack.c.b16 %v68, %v66
  %v93 = vpack.c.b16 %v69, %v67
  %v94 = vpack.c.b16 %v72, %v70
  %v95 = vpack.c.b16 %v73, %v71
  %v96 = vpack.c.b16 %v76, %v74
  %v97 = vpack.c.b16 %v77, %v75
  %v98 = vpack.c.b16 %v80, %v78
  %v99 = vpack.c.b16 %v81, %v79
  %v100 = vpack.c.b16 %v84, %v82
  %v101 = vpack.c.b16 %v85, %v83
  %118 = vmatprep.subr.bf16.mxu0 %v87
  %119 = vmatpush1.bf16.msra.mxu0 %v86
  %120 = vmatprep.subr.bf16.mxu0 %v89
  %121 = vmatpush1.bf16.msra.mxu0 %v88
  %122 = vmatprep.subr.bf16.mxu0 %v91
  %123 = vmatpush1.bf16.msra.mxu0 %v90
  %124 = vmatprep.subr.bf16.mxu0 %v93
  %125 = vmatpush1.bf16.msra.mxu0 %v92
  %126 = vmatprep.subr.bf16.mxu0 %v95
  %127 = vmatpush1.bf16.msra.mxu0 %v94
  %128 = vmatprep.subr.bf16.mxu0 %v97
  %129 = vmatpush1.bf16.msra.mxu0 %v96
  %130 = vmatprep.subr.bf16.mxu0 %v99
  %131 = vmatpush1.bf16.msra.mxu0 %v98
  %132 = vmatprep.subr.bf16.mxu0 %v101
  %133 = vmatpush1.bf16.msra.mxu0 %v100
  %134 = vmatprep.subr.bf16.mxu0 0
  %135 = vmatpush1.bf16.msra.mxu0 0
  %136 = vmatprep.subr.bf16.mxu0 0
  %137 = vmatpush1.bf16.msra.mxu0 0
  %138 = vmatprep.subr.bf16.mxu0 0
  %139 = vmatpush1.bf16.msra.mxu0 0
  %140 = vmatprep.subr.bf16.mxu0 0
  %141 = vmatpush1.bf16.msra.mxu0 0
  %142 = vmatprep.subr.bf16.mxu0 0
  %143 = vmatpush1.bf16.msra.mxu0 0
  %144 = vmatprep.subr.bf16.mxu0 0
  %145 = vmatpush1.bf16.msra.mxu0 0
  %146 = vmatprep.subr.bf16.mxu0 0
  %147 = vmatpush1.bf16.msra.mxu0 0
  %148 = vmatprep.subr.bf16.mxu0 0
  %149 = vmatpush1.bf16.msra.mxu0 0
  %150 = vmatprep.mubr.bf16.mxu0 0
  %151 = vmatmul.mubr.bf16.gmra.mrb[0].mxu0 %v15
  %v152 = vpop.f32.mrb[0].mxu0
  %v153 = vadd.f32 %v36, %v152
  %v154 = vpop.f32.mrb[0].mxu0
  %v155 = vadd.f32 %v36, %v154
  %v156 = vpop.f32.mrb[0].mxu0
  %v157 = vpop.f32.mrb[0].mxu0
  %158 = vdwg.mxu0
  %vm159 = vcmp.ge.f32.partialorder %v153, 0.0
  %vm160 = vcmp.ge.f32.partialorder %v155, 0.0
  %v161 = vmul.f32 %v153, 0.2
  %v162 = vmul.f32 %v155, 0.2
  %v163 = vsel %vm159, %v153, %v161
  %v164 = vsel %vm160, %v155, %v162
  %165 = vst [vmem:[%s3] sm:$0xff] %v163
  %166 = vst [vmem:[%s3 + $0x8] sm:$0xff] %v164
  // Predicated region
  $region14: #{_forward_impl.5} parent=0 // pred_check
    _
  $region15: #{_forward_impl.5} parent=0 // pred_check_branch
    %168 = sbr.rel (0) target = $region17
  $region16: #{_forward_impl.5} parent=0 // pred_region
    _
  $region17: #{_forward_impl.5} parent=0 // pred_fallthru
    _
  // Predicated region
  $region18: #{_forward_impl.5} parent=0 // pred_check
    _
  $region19: #{_forward_impl.5} parent=0 // pred_check_branch
    %170 = sbr.rel (0) target = $region21
  $region20: #{_forward_impl.5} parent=0 // pred_region
    _
  $region21: #{_forward_impl.5} parent=0 // pred_fallthru
    _

// kernel: _forward_impl.6
$region0: #{_forward_impl.6}
  #allocation0 [shape = 'u32[]', space=smem, size = 0x4, offset = 0x4, fixed_abs, tag = 'smem constant byte address 0x4 - core index']
  #allocation1 [shape = 'u32[144,128]{1,0:T(1,128)}', space=vmem, size = 0x12000, scoped, tag = 'internal scratch']
  %s0 = inlined_call_operand.vmem [shape: bf16[8,128], index: 0, kind: input, shape index: {}]
  %s1 = inlined_call_operand.vmem [shape: bf16[128,128], index: 1, kind: input, shape index: {}]
  %s2 = inlined_call_operand.vmem [shape: f32[8,1], index: 2, kind: input, shape index: {}]
  %s3 = inlined_call_operand.vmem [shape: f32[8,128], index: 3, kind: output, shape index: {}]
  %s4 = sld [smem:[#allocation0]]
  $region22: #{_forward_impl.6} parent=0
    _
  %s6 = ssub.s32 1, %s4
  %s7 = scalar_select 0, %s6, %s4
  // Predicated region
  $region2: #{_forward_impl.6} parent=0 // pred_check
    _
  $region3: #{_forward_impl.6} parent=0 // pred_check_branch
    %9 = sbr.rel (0) target = $region5
  $region4: #{_forward_impl.6} parent=0 // pred_region
    _
  $region5: #{_forward_impl.6} parent=0 // pred_fallthru
    _
  // Predicated region
  $region6: #{_forward_impl.6} parent=0 // pred_check
    _
  $region7: #{_forward_impl.6} parent=0 // pred_check_branch
    %11 = sbr.rel (0) target = $region9
  $region8: #{_forward_impl.6} parent=0 // pred_region
    _
  $region9: #{_forward_impl.6} parent=0 // pred_fallthru
    _
  // Predicated region
  $region10: #{_forward_impl.6} parent=0 // pred_check
    _
  $region11: #{_forward_impl.6} parent=0 // pred_check_branch
    %13 = sbr.rel (0) target = $region13
  $region12: #{_forward_impl.6} parent=0 // pred_region
    _
  $region13: #{_forward_impl.6} parent=0 // pred_fallthru
    _
  %v15 = vld [vmem:[%s0] sm:$0xf]
  %v16 = vld [vmem:[%s1] sm:$0xf]
  %v17 = vld [vmem:[%s1 + $0x4] sm:$0xf]
  %v18 = vld [vmem:[%s1 + $0x8] sm:$0xf]
  %v19 = vld [vmem:[%s1 + $0xc] sm:$0xf]
  %v20 = vld [vmem:[%s1 + $0x10] sm:$0xf]
  %v21 = vld [vmem:[%s1 + $0x14] sm:$0xf]
  %v22 = vld [vmem:[%s1 + $0x18] sm:$0xf]
  %v23 = vld [vmem:[%s1 + $0x1c] sm:$0xf]
  %v24 = vld [vmem:[%s1 + $0x20] sm:$0xf]
  %v25 = vld [vmem:[%s1 + $0x24] sm:$0xf]
  %v26 = vld [vmem:[%s1 + $0x28] sm:$0xf]
  %v27 = vld [vmem:[%s1 + $0x2c] sm:$0xf]
  %v28 = vld [vmem:[%s1 + $0x30] sm:$0xf]
  %v29 = vld [vmem:[%s1 + $0x34] sm:$0xf]
  %v30 = vld [vmem:[%s1 + $0x38] sm:$0xf]
  %v31 = vld [vmem:[%s1 + $0x3c] sm:$0xf]
  %v32 = vld [vmem:[%s2] sm:$0xff]
  %34 = vset.pattern.permute.xlu0 0
  %35 = vperm.xlu0 %34, %v32
  %v36 = vpop.permute.xlu0 %35
  %v54 = vunpack.c.l.b16 %v16
  %v55 = vunpack.c.l.b16 %v17
  %v56 = vunpack.c.l.b16 %v18
  %v57 = vunpack.c.l.b16 %v19
  %v58 = vunpack.c.l.b16 %v20
  %v59 = vunpack.c.l.b16 %v21
  %v60 = vunpack.c.l.b16 %v22
  %v61 = vunpack.c.l.b16 %v23
  %v62 = vunpack.c.l.b16 %v24
  %v63 = vunpack.c.l.b16 %v25
  %v64 = vunpack.c.l.b16 %v26
  %v65 = vunpack.c.l.b16 %v27
  %v66 = vunpack.c.l.b16 %v28
  %v67 = vunpack.c.l.b16 %v29
  %v68 = vunpack.c.l.b16 %v30
  %v69 = vunpack.c.l.b16 %v31
  %v70 = vpack.c.b16 %v55, %v54
  %v71 = vpack.c.b16 %v57, %v56
  %v72 = vpack.c.b16 %v59, %v58
  %v73 = vpack.c.b16 %v61, %v60
  %v74 = vpack.c.b16 %v63, %v62
  %v75 = vpack.c.b16 %v65, %v64
  %v76 = vpack.c.b16 %v67, %v66
  %v77 = vpack.c.b16 %v69, %v68
  %86 = vmatprep.subr.bf16.mxu0 0
  %87 = vmatpush1.bf16.msra.mxu0 %v70
  %88 = vmatprep.subr.bf16.mxu0 0
  %89 = vmatpush1.bf16.msra.mxu0 %v71
  %90 = vmatprep.subr.bf16.mxu0 0
  %91 = vmatpush1.bf16.msra.mxu0 %v72
  %92 = vmatprep.subr.bf16.mxu0 0
  %93 = vmatpush1.bf16.msra.mxu0 %v73
  %94 = vmatprep.subr.bf16.mxu0 0
  %95 = vmatpush1.bf16.msra.mxu0 %v74
  %96 = vmatprep.subr.bf16.mxu0 0
  %97 = vmatpush1.bf16.msra.mxu0 %v75
  %98 = vmatprep.subr.bf16.mxu0 0
  %99 = vmatpush1.bf16.msra.mxu0 %v76
  %100 = vmatprep.subr.bf16.mxu0 0
  %101 = vmatpush1.bf16.msra.mxu0 %v77
  %102 = vmatprep.subr.bf16.mxu0 0
  %103 = vmatpush1.bf16.msra.mxu0 0
  %104 = vmatprep.subr.bf16.mxu0 0
  %105 = vmatpush1.bf16.msra.mxu0 0
  %106 = vmatprep.subr.bf16.mxu0 0
  %107 = vmatpush1.bf16.msra.mxu0 0
  %108 = vmatprep.subr.bf16.mxu0 0
  %109 = vmatpush1.bf16.msra.mxu0 0
  %110 = vmatprep.subr.bf16.mxu0 0
  %111 = vmatpush1.bf16.msra.mxu0 0
  %112 = vmatprep.subr.bf16.mxu0 0
  %113 = vmatpush1.bf16.msra.mxu0 0
  %114 = vmatprep.subr.bf16.mxu0 0
  %115 = vmatpush1.bf16.msra.mxu0 0
  %116 = vmatprep.subr.bf16.mxu0 0
  %117 = vmatpush1.bf16.msra.mxu0 0
  %118 = vmatprep.mubr.bf16.mxu0 0
  %119 = vmatmul.mubr.bf16.gmra.mrb[0].mxu0 %v15
  %v120 = vpop.f32.mrb[0].mxu0
  %v121 = vadd.f32 %v36, %v120
  %v122 = vpop.f32.mrb[0].mxu0
  %v123 = vpop.f32.mrb[0].mxu0
  %v124 = vpop.f32.mrb[0].mxu0
  %125 = vdwg.mxu0
  %vm126 = vcmp.ge.f32.partialorder %v121, 0.0
  %v127 = vmul.f32 %v121, 0.2
  %v128 = vsel %vm126, %v121, %v127
  %129 = vst [vmem:[%s3] sm:$0xff] %v128
  // Predicated region
  $region14: #{_forward_impl.6} parent=0 // pred_check
    _
  $region15: #{_forward_impl.6} parent=0 // pred_check_branch
    %131 = sbr.rel (0) target = $region17
  $region16: #{_forward_impl.6} parent=0 // pred_region
    _
  $region17: #{_forward_impl.6} parent=0 // pred_fallthru
    _
  // Predicated region
  $region18: #{_forward_impl.6} parent=0 // pred_check
    _
  $region19: #{_forward_impl.6} parent=0 // pred_check_branch
    %133 = sbr.rel (0) target = $region21
  $region20: #{_forward_impl.6} parent=0 // pred_region
    _
  $region21: #{_forward_impl.6} parent=0 // pred_fallthru
    _

// kernel: _forward_impl.9
$region0: #{_forward_impl.9}
  #allocation0 [shape = 'u32[]', space=smem, size = 0x4, offset = 0x4, fixed_abs, tag = 'smem constant byte address 0x4 - core index']
  #allocation1 [shape = 'u32[144,128]{1,0:T(1,128)}', space=vmem, size = 0x12000, scoped, tag = 'internal scratch']
  %s0 = inlined_call_operand.vmem [shape: bf16[8,128], index: 0, kind: input, shape index: {}]
  %s1 = inlined_call_operand.vmem [shape: bf16[128,128], index: 1, kind: input, shape index: {}]
  %s2 = inlined_call_operand.vmem [shape: f32[8,1], index: 2, kind: input, shape index: {}]
  %s3 = inlined_call_operand.vmem [shape: f32[8,128], index: 3, kind: output, shape index: {}]
  %s4 = sld [smem:[#allocation0]]
  $region22: #{_forward_impl.9} parent=0
    _
  %s6 = ssub.s32 1, %s4
  %s7 = scalar_select 0, %s6, %s4
  // Predicated region
  $region2: #{_forward_impl.9} parent=0 // pred_check
    _
  $region3: #{_forward_impl.9} parent=0 // pred_check_branch
    %9 = sbr.rel (0) target = $region5
  $region4: #{_forward_impl.9} parent=0 // pred_region
    _
  $region5: #{_forward_impl.9} parent=0 // pred_fallthru
    _
  // Predicated region
  $region6: #{_forward_impl.9} parent=0 // pred_check
    _
  $region7: #{_forward_impl.9} parent=0 // pred_check_branch
    %11 = sbr.rel (0) target = $region9
  $region8: #{_forward_impl.9} parent=0 // pred_region
    _
  $region9: #{_forward_impl.9} parent=0 // pred_fallthru
    _
  // Predicated region
  $region10: #{_forward_impl.9} parent=0 // pred_check
    _
  $region11: #{_forward_impl.9} parent=0 // pred_check_branch
    %13 = sbr.rel (0) target = $region13
  $region12: #{_forward_impl.9} parent=0 // pred_region
    _
  $region13: #{_forward_impl.9} parent=0 // pred_fallthru
    _
  %v15 = vld [vmem:[%s0] sm:$0xf]
  %v16 = vld [vmem:[%s1] sm:$0xf]
  %v17 = vld [vmem:[%s1 + $0x4] sm:$0xf]
  %v18 = vld [vmem:[%s1 + $0x8] sm:$0xf]
  %v19 = vld [vmem:[%s1 + $0xc] sm:$0xf]
  %v20 = vld [vmem:[%s1 + $0x10] sm:$0xf]
  %v21 = vld [vmem:[%s1 + $0x14] sm:$0xf]
  %v22 = vld [vmem:[%s1 + $0x18] sm:$0xf]
  %v23 = vld [vmem:[%s1 + $0x1c] sm:$0xf]
  %v24 = vld [vmem:[%s1 + $0x20] sm:$0xf]
  %v25 = vld [vmem:[%s1 + $0x24] sm:$0xf]
  %v26 = vld [vmem:[%s1 + $0x28] sm:$0xf]
  %v27 = vld [vmem:[%s1 + $0x2c] sm:$0xf]
  %v28 = vld [vmem:[%s1 + $0x30] sm:$0xf]
  %v29 = vld [vmem:[%s1 + $0x34] sm:$0xf]
  %v30 = vld [vmem:[%s1 + $0x38] sm:$0xf]
  %v31 = vld [vmem:[%s1 + $0x3c] sm:$0xf]
  %v32 = vld [vmem:[%s2] sm:$0xff]
  %34 = vset.pattern.permute.xlu0 0
  %35 = vperm.xlu0 %34, %v32
  %v36 = vpop.permute.xlu0 %35
  %v54 = vunpack.c.l.b16 %v16
  %v55 = vunpack.c.l.b16 %v17
  %v56 = vunpack.c.l.b16 %v18
  %v57 = vunpack.c.l.b16 %v19
  %v58 = vunpack.c.l.b16 %v20
  %v59 = vunpack.c.l.b16 %v21
  %v60 = vunpack.c.l.b16 %v22
  %v61 = vunpack.c.l.b16 %v23
  %v62 = vunpack.c.l.b16 %v24
  %v63 = vunpack.c.l.b16 %v25
  %v64 = vunpack.c.l.b16 %v26
  %v65 = vunpack.c.l.b16 %v27
  %v66 = vunpack.c.l.b16 %v28
  %v67 = vunpack.c.l.b16 %v29
  %v68 = vunpack.c.l.b16 %v30
  %v69 = vunpack.c.l.b16 %v31
  %v70 = vpack.c.b16 %v55, %v54
  %v71 = vpack.c.b16 %v57, %v56
  %v72 = vpack.c.b16 %v59, %v58
  %v73 = vpack.c.b16 %v61, %v60
  %v74 = vpack.c.b16 %v63, %v62
  %v75 = vpack.c.b16 %v65, %v64
  %v76 = vpack.c.b16 %v67, %v66
  %v77 = vpack.c.b16 %v69, %v68
  %86 = vmatprep.subr.bf16.mxu0 0
  %87 = vmatpush1.bf16.msra.mxu0 %v70
  %88 = vmatprep.subr.bf16.mxu0 0
  %89 = vmatpush1.bf16.msra.mxu0 %v71
  %90 = vmatprep.subr.bf16.mxu0 0
  %91 = vmatpush1.bf16.msra.mxu0 %v72
  %92 = vmatprep.subr.bf16.mxu0 0
  %93 = vmatpush1.bf16.msra.mxu0 %v73
  %94 = vmatprep.subr.bf16.mxu0 0
  %95 = vmatpush1.bf16.msra.mxu0 %v74
  %96 = vmatprep.subr.bf16.mxu0 0
  %97 = vmatpush1.bf16.msra.mxu0 %v75
  %98 = vmatprep.subr.bf16.mxu0 0
  %99 = vmatpush1.bf16.msra.mxu0 %v76
  %100 = vmatprep.subr.bf16.mxu0 0
  %101 = vmatpush1.bf16.msra.mxu0 %v77
  %102 = vmatprep.subr.bf16.mxu0 0
  %103 = vmatpush1.bf16.msra.mxu0 0
  %104 = vmatprep.subr.bf16.mxu0 0
  %105 = vmatpush1.bf16.msra.mxu0 0
  %106 = vmatprep.subr.bf16.mxu0 0
  %107 = vmatpush1.bf16.msra.mxu0 0
  %108 = vmatprep.subr.bf16.mxu0 0
  %109 = vmatpush1.bf16.msra.mxu0 0
  %110 = vmatprep.subr.bf16.mxu0 0
  %111 = vmatpush1.bf16.msra.mxu0 0
  %112 = vmatprep.subr.bf16.mxu0 0
  %113 = vmatpush1.bf16.msra.mxu0 0
  %114 = vmatprep.subr.bf16.mxu0 0
  %115 = vmatpush1.bf16.msra.mxu0 0
  %116 = vmatprep.subr.bf16.mxu0 0
  %117 = vmatpush1.bf16.msra.mxu0 0
  %118 = vmatprep.mubr.bf16.mxu0 0
  %119 = vmatmul.mubr.bf16.gmra.mrb[0].mxu0 %v15
  %v120 = vpop.f32.mrb[0].mxu0
  %v121 = vadd.f32 %v36, %v120
  %v122 = vpop.f32.mrb[0].mxu0
  %v123 = vpop.f32.mrb[0].mxu0
  %v124 = vpop.f32.mrb[0].mxu0
  %125 = vdwg.mxu0
  %126 = vst [vmem:[%s3] sm:$0xff] %v121
  // Predicated region
  $region14: #{_forward_impl.9} parent=0 // pred_check
    _
  $region15: #{_forward_impl.9} parent=0 // pred_check_branch
    %128 = sbr.rel (0) target = $region17
  $region16: #{_forward_impl.9} parent=0 // pred_region
    _
  $region17: #{_forward_impl.9} parent=0 // pred_fallthru
    _
  // Predicated region
  $region18: #{_forward_impl.9} parent=0 // pred_check
    _
  $region19: #{_forward_impl.9} parent=0 // pred_check_branch
    %130 = sbr.rel (0) target = $region21
  $region20: #{_forward_impl.9} parent=0 // pred_region
    _
  $region21: #{_forward_impl.9} parent=0 // pred_fallthru
    _

</llo_original>
